<compile_context>
chip_gen: v7x
topology: tpu7x:2x2x1
jax: 0.10.0
libtpu: 0.0.40
codegen_flags: <defaults>
</compile_context>

<pallas_src>
import jax
import jax.numpy as jnp
from jax.experimental import pallas as pl
from jax.experimental.pallas import tpu as pltpu

LANE = 128
BIG_LOGIT = 200.0  # BCE(200, 1) == 0 exactly in f32 (exp(-200) underflows)


def _bce_with_logits_f32(x, t):
    # Numerically stable binary_cross_entropy_with_logits, reduction='none':
    #   max(x, 0) - x*t + log1p(exp(-|x|))
    return jnp.maximum(x, 0.0) - x * t + jnp.log1p(jnp.exp(-jnp.abs(x)))


def _partial_sum(loss, out_ref):
    # (row_tile, 128) -> (row_tile//8, 8, 128) regroup (tile-aligned, free)
    # and sum over the leading axis: pure VPU adds, no XLU lane reduce.
    r, l = loss.shape
    out_ref[...] = loss.reshape(r // 8, 8, l).sum(axis=0)


def _kernel_masked(x_ref, p_ref, t_ref, out_ref):
    # teacher_forcing_or == True path: loss = (1 - pred) * target * BCE
    # (batch mask already folded into target in the wrapper).
    x = x_ref[...].astype(jnp.float32)
    p = p_ref[...].astype(jnp.float32)
    t = t_ref[...].astype(jnp.float32)
    loss = (1.0 - p) * t * _bce_with_logits_f32(x, t)
    _partial_sum(loss, out_ref)


def _kernel_plain(x_ref, t_ref, out_ref):
    # teacher_forcing_or == False path: unselected / padded elements were
    # rewritten to (x=BIG_LOGIT, t=1) in the wrapper, so their BCE is 0.
    x = x_ref[...].astype(jnp.float32)
    t = t_ref[...].astype(jnp.float32)
    _partial_sum(_bce_with_logits_f32(x, t), out_ref)


def _flatten_pad(a, rows_padded, fill):
    """Flatten a (B, C) array into a lane-dense (rows_padded, 128) slab,
    padding with `fill` (chosen so padded elements contribute exactly 0)."""
    flat = a.reshape(-1)
    pad = rows_padded * LANE - flat.shape[0]
    if pad:
        flat = jnp.pad(flat, (0, pad), constant_values=fill)
    return flat.reshape(rows_padded, LANE)


def teacher_forcing_loss(logits, pred, target, teacher_forcing, *,
                         teacher_forcing_or=True, lambda_forcing_loss=0.5,
                         row_tile=2048):
    B, C, _K = logits.shape

    # Glue for torch.index_select(logits, dim=2, index=[0]).squeeze(2).
    # TODO(synk): store logits upstream as (K, B, C) so this dim-2 select is a
    # free contiguous slice instead of a strided gather materializing (B, C).
    logits2d = logits[:, :, 0]                 # native dtype, no wrapper upcast

    tf_bool = teacher_forcing.astype(bool)
    tmask = tf_bool.reshape(B, 1)
    # Number of selected batch rows: trivial reduction, done by XLA.
    n_sel = jnp.sum(tf_bool.astype(jnp.float32))

    # Lane-dense tiling over the flattened element count.
    total = B * C
    rows = -(-total // LANE)                           # ceil(total / 128)
    rows_r8 = ((rows + 7) // 8) * 8                    # multiple of 8 sublanes
    row_tile = max(8, (min(int(row_tile), rows_r8) // 8) * 8)
    num_tiles = -(-rows_r8 // row_tile)
    rows_padded = num_tiles * row_tile

    tile_spec = pl.BlockSpec((row_tile, LANE), lambda i: (i, 0))
    out_spec = pl.BlockSpec((8, LANE), lambda i: (i, 0))

    if teacher_forcing_or:
        # Fold the batch mask into the target: (1-p)*t'*BCE(x,t') with
        # t' = t*mask equals the reference exactly (masked rows give 0).
        t_fold = jnp.where(tmask, target, jnp.zeros((), target.dtype))
        x2 = _flatten_pad(logits2d, rows_padded, 0.0)
        p2 = _flatten_pad(pred, rows_padded, 0.0)
        t2 = _flatten_pad(t_fold, rows_padded, 0.0)   # pad t'=0 -> term is 0
        kernel = _kernel_masked
        operands = (x2, p2, t2)
        in_specs = [tile_spec, tile_spec, tile_spec]
    else:
        # Rewrite unselected rows (and the padding) to (x=BIG, t=1), whose
        # stable BCE is exactly 0 in f32 -> no weight stream needed at all.
        x_fold = jnp.where(tmask, logits2d,
                           jnp.asarray(BIG_LOGIT, logits2d.dtype))
        t_fold = jnp.where(tmask, target, jnp.asarray(1.0, target.dtype))
        x2 = _flatten_pad(x_fold, rows_padded, BIG_LOGIT)
        t2 = _flatten_pad(t_fold, rows_padded, 1.0)
        kernel = _kernel_plain
        operands = (x2, t2)
        in_specs = [tile_spec, tile_spec]

    partial = pl.pallas_call(
        kernel,
        out_shape=jax.ShapeDtypeStruct((num_tiles * 8, LANE), jnp.float32),
        grid=(num_tiles,),
        in_specs=in_specs,
        out_specs=out_spec,
        compiler_params=pltpu.CompilerParams(
            dimension_semantics=("parallel",)),      # megacore-friendly
    )(*operands)

    # Tiny finalize in XLA: sum partials, masked-mean, scale.
    total_loss = jnp.sum(partial)
    denom = n_sel * float(C)
    # Original PyTorch guards `if len(teacher_loss) > 0 else 0.0`, so 0.0 on
    # an empty selection matches the module's semantics exactly.
    mean = jnp.where(n_sel > 0.0, total_loss / jnp.maximum(denom, 1.0), 0.0)
    return mean * float(lambda_forcing_loss)


def _reference(logits, pred, target, teacher_forcing, teacher_forcing_or, lam):
    """Pure-JAX replica of the PyTorch forward (masked-mean formulation)."""
    x = logits[:, :, 0].astype(jnp.float32)
    t = target.astype(jnp.float32)
    p = pred.astype(jnp.float32)
    loss = jnp.maximum(x, 0.0) - x * t + jnp.log1p(jnp.exp(-jnp.abs(x)))
    if teacher_forcing_or:
        loss = (1.0 - p) * t * loss
    wmask = teacher_forcing.astype(jnp.float32)[:, None]
    n_sel = jnp.sum(wmask)
    denom = n_sel * x.shape[1]
    mean = jnp.where(n_sel > 0.0,
                     jnp.sum(loss * wmask) / jnp.maximum(denom, 1.0),
                     0.0)
    return mean * lam


def _check(logits, pred, target, tf, tf_or, lam, **kw):
    out = jax.block_until_ready(teacher_forcing_loss(
        logits, pred, target, tf, teacher_forcing_or=tf_or,
        lambda_forcing_loss=lam, **kw))
    ref = _reference(logits, pred, target, tf, tf_or, lam)
    assert jnp.allclose(out, ref, rtol=1e-5, atol=1e-6), (out, ref)
    return out


if __name__ == "__main__":
    key = jax.random.PRNGKey(0)
    k1, k2, k3, k4, k5, k6, k7, k8 = jax.random.split(key, 8)
    lam = 0.5

    # Small shape (single tile), both paths.
    B, C, K = 8, 4, 3
    logits = jax.random.normal(k1, (B, C, K), dtype=jnp.float32)
    pred = jax.nn.sigmoid(jax.random.normal(k2, (B, C), dtype=jnp.float32))
    target = (jax.random.uniform(k3, (B, C)) > 0.5).astype(jnp.float32)
    tf = jax.random.uniform(k4, (B,)) > 0.4          # bool batch mask
    _check(logits, pred, target, tf, True, lam)
    _check(logits, pred, target, tf, False, lam)

    # Multi-tile grid path (row_tile=8 forces 2 grid steps) + padding path.
    B2, C2, K2 = 16, 100, 2
    logits2 = jax.random.normal(k5, (B2, C2, K2), dtype=jnp.float32)
    pred2 = jax.nn.sigmoid(jax.random.normal(k6, (B2, C2), dtype=jnp.float32))
    target2 = (jax.random.uniform(k7, (B2, C2)) > 0.5).astype(jnp.float32)
    tf2 = jax.random.uniform(k8, (B2,)) > 0.3
    _check(logits2, pred2, target2, tf2, True, lam, row_tile=8)
    _check(logits2, pred2, target2, tf2, False, lam, row_tile=8)

    # Empty selection -> exact 0.0 (matches `len(teacher_loss) > 0` guard).
    tf_none = jnp.zeros((B,), dtype=bool)
    out0 = _check(logits, pred, target, tf_none, True, lam)
    assert jnp.allclose(out0, 0.0), out0

    print("KERNEL_OK")
</pallas_src>

<mosaic_0001>
module attributes {stable_mosaic.version = 11 : i64} {
  func.func @_kernel_masked(%arg0: i32, %arg1: memref<8x128xf32, #tpu.memory_space<vmem>>, %arg2: memref<8x128xf32, #tpu.memory_space<vmem>>, %arg3: memref<8x128xf32, #tpu.memory_space<vmem>>, %arg4: memref<8x128xf32, #tpu.memory_space<vmem>>) attributes {dimension_semantics = [#tpu.dimension_semantics<parallel>], iteration_bounds = array<i64: 1>, scalar_prefetch = 0 : i64, scratch_operands = 0 : i64, tpu.core_type = #tpu.core_type<tc>, window_params = [{transform_indices = @transform_0, window_bounds = array<i64: 8, 128>}, {transform_indices = @transform_1, window_bounds = array<i64: 8, 128>}, {transform_indices = @transform_2, window_bounds = array<i64: 8, 128>}, {transform_indices = @transform_3, window_bounds = array<i64: 8, 128>}]} {
    %c0 = arith.constant 0 : index
    %c0_0 = arith.constant 0 : index
    %0 = vector.load %arg1[%c0, %c0_0] : memref<8x128xf32, #tpu.memory_space<vmem>>, vector<8x128xf32>
    %c0_1 = arith.constant 0 : index
    %c0_2 = arith.constant 0 : index
    %1 = vector.load %arg2[%c0_1, %c0_2] : memref<8x128xf32, #tpu.memory_space<vmem>>, vector<8x128xf32>
    %c0_3 = arith.constant 0 : index
    %c0_4 = arith.constant 0 : index
    %2 = vector.load %arg3[%c0_3, %c0_4] : memref<8x128xf32, #tpu.memory_space<vmem>>, vector<8x128xf32>
    %cst = arith.constant 1.000000e+00 : f32
    %3 = vector.broadcast %cst : f32 to vector<8x128xf32>
    %4 = arith.subf %3, %1 : vector<8x128xf32>
    %5 = arith.mulf %4, %2 : vector<8x128xf32>
    %cst_5 = arith.constant 0.000000e+00 : f32
    %6 = vector.broadcast %cst_5 : f32 to vector<8x128xf32>
    %7 = arith.maximumf %0, %6 : vector<8x128xf32>
    %8 = arith.mulf %0, %2 : vector<8x128xf32>
    %9 = arith.subf %7, %8 : vector<8x128xf32>
    %10 = math.absf %0 : vector<8x128xf32>
    %cst_6 = arith.constant 0.000000e+00 : f32
    %11 = vector.broadcast %cst_6 : f32 to vector<8x128xf32>
    %12 = arith.subf %11, %10 : vector<8x128xf32>
    %13 = math.exp %12 : vector<8x128xf32>
    %14 = math.log1p %13 : vector<8x128xf32>
    %15 = arith.addf %9, %14 : vector<8x128xf32>
    %16 = arith.mulf %5, %15 : vector<8x128xf32>
    %17 = vector.shape_cast %16 : vector<8x128xf32> to vector<1x8x128xf32>
    %cst_7 = arith.constant dense<0.000000e+00> : vector<8x128xf32>
    %18 = vector.multi_reduction <add>, %17, %cst_7 [0] : vector<1x8x128xf32> to vector<8x128xf32>
    %c0_8 = arith.constant 0 : index
    %c0_9 = arith.constant 0 : index
    %19 = vector.load %arg4[%c0_8, %c0_9] : memref<8x128xf32, #tpu.memory_space<vmem>>, vector<8x128xf32>
    tpu.vector_store %arg4[%c0_8, %c0_9], %18 {strides = array<i32>} : memref<8x128xf32, #tpu.memory_space<vmem>>, vector<8x128xf32>,
    return
  }
  func.func @transform_0(%arg0: i32) -> (i32, i32) {
    %c0_i32 = arith.constant 0 : i32
    %c0_i32_0 = arith.constant 0 : i32
    return %arg0, %c0_i32 : i32, i32
  }
  func.func @transform_1(%arg0: i32) -> (i32, i32) {
    %c0_i32 = arith.constant 0 : i32
    %c0_i32_0 = arith.constant 0 : i32
    return %arg0, %c0_i32 : i32, i32
  }
  func.func @transform_2(%arg0: i32) -> (i32, i32) {
    %c0_i32 = arith.constant 0 : i32
    %c0_i32_0 = arith.constant 0 : i32
    return %arg0, %c0_i32 : i32, i32
  }
  func.func @transform_3(%arg0: i32) -> (i32, i32) {
    %c0_i32 = arith.constant 0 : i32
    %c0_i32_0 = arith.constant 0 : i32
    return %arg0, %c0_i32 : i32, i32
  }
}

</mosaic_0001>

<llo_original>
// kernel: tpu_custom_call.1
$region0: #{tpu_custom_call.1}
  #allocation0 [shape = 'u32[]', space=smem, size = 0x4, offset = 0x4, fixed_abs, tag = 'smem constant byte address 0x4 - core index']
  #allocation1 [shape = 'u32[144,128]{1,0:T(1,128)}', space=vmem, size = 0x12000, scoped, tag = 'internal scratch']
  %s0 = inlined_call_operand.hbm [shape: f32[8,128], index: 0, kind: input, shape index: {}]
  %s1 = inlined_call_operand.hbm [shape: f32[8,128], index: 1, kind: input, shape index: {}]
  %s2 = inlined_call_operand.hbm [shape: f32[8,128], index: 2, kind: input, shape index: {}]
  %s3 = inlined_call_operand.hbm [shape: f32[8,128], index: 3, kind: output, shape index: {}]
  %s4 = sld [smem:[#allocation0]]
  $region34: #{tpu_custom_call.1} parent=0
    _
  %s6 = ssub.s32 1, %s4
  %s7 = scalar_select 0, %s6, %s4
  $region1: #{tpu_custom_call.1} parent=0
    #allocation2 [shape = 'u8[4096]{0}', space=vmem, size = 0x1000, scoped, tag = 'input window, operand 0, single buffered']
    #allocation3 [shape = 's32[1]{0}', space=sflag, size = 0x4, scoped, tag = 'scoped memory for tpu_custom_call.1']
    #allocation4 [shape = 's32[1]{0}', space=sflag, size = 0x4, scoped, tag = 'scoped memory for tpu_custom_call.1']
    #allocation5 [shape = 'u8[4096]{0}', space=vmem, size = 0x1000, scoped, tag = 'input window, operand 1, single buffered']
    #allocation6 [shape = 's32[1]{0}', space=sflag, size = 0x4, scoped, tag = 'scoped memory for tpu_custom_call.1']
    #allocation7 [shape = 'u8[4096]{0}', space=vmem, size = 0x1000, scoped, tag = 'input window, operand 2, single buffered']
    #allocation8 [shape = 'u8[4096]{0}', space=vmem, size = 0x1000, scoped, tag = 'output window, operand 0, single buffered']
    %8 = vsyncpa [#allocation3], 0
    %9 = vsyncpa [#allocation6], 0
    %10 = vsyncpa [#allocation4], 0
    // Predicated region
    $region2: #{tpu_custom_call.1} parent=1 // pred_check
      _
    $region3: #{tpu_custom_call.1} parent=1 // pred_check_branch
      %12 = sbr.rel (0) target = $region5
    $region4: #{tpu_custom_call.1} parent=1 // pred_region
      %s14 = ssub.s32 128, 128
      %15 = vsyncadd [#allocation3], %s14
      %s17 = sshll.u32 [#allocation2], 4
      %s18 = int_to_ptr.vmem [resolvable:$true] %s17
      %20 = dma.hbm_to_vmem [thread:$0]  %s0, 128, %s18, [#allocation3]
    $region5: #{tpu_custom_call.1} parent=1 // pred_fallthru
      _
    // Predicated region
    $region6: #{tpu_custom_call.1} parent=1 // pred_check
      _
    $region7: #{tpu_custom_call.1} parent=1 // pred_check_branch
      %22 = sbr.rel (0) target = $region9
    $region8: #{tpu_custom_call.1} parent=1 // pred_region
      %s24 = ssub.s32 128, 128
      %25 = vsyncadd [#allocation6], %s24
      %s27 = sshll.u32 [#allocation5], 4
      %s28 = int_to_ptr.vmem [resolvable:$true] %s27
      %30 = dma.hbm_to_vmem [thread:$0]  %s1, 128, %s28, [#allocation6]
    $region9: #{tpu_custom_call.1} parent=1 // pred_fallthru
      _
    // Predicated region
    $region10: #{tpu_custom_call.1} parent=1 // pred_check
      _
    $region11: #{tpu_custom_call.1} parent=1 // pred_check_branch
      %32 = sbr.rel (0) target = $region13
    $region12: #{tpu_custom_call.1} parent=1 // pred_region
      %s34 = ssub.s32 128, 128
      %35 = vsyncadd [#allocation6], %s34
      %s37 = sshll.u32 [#allocation7], 4
      %s38 = int_to_ptr.vmem [resolvable:$true] %s37
      %40 = dma.hbm_to_vmem [thread:$0]  %s2, 128, %s38, [#allocation6]
    $region13: #{tpu_custom_call.1} parent=1 // pred_fallthru
      _
    // Predicated region
    $region14: #{tpu_custom_call.1} parent=1 // pred_check
      _
    $region15: #{tpu_custom_call.1} parent=1 // pred_check_branch
      %42 = sbr.rel (0) target = $region17
    $region16: #{tpu_custom_call.1} parent=1 // pred_region
      %43 = dma.done [#allocation3], 128
    $region17: #{tpu_custom_call.1} parent=1 // pred_fallthru
      _
    // Predicated region
    $region18: #{tpu_custom_call.1} parent=1 // pred_check
      _
    $region19: #{tpu_custom_call.1} parent=1 // pred_check_branch
      %45 = sbr.rel (0) target = $region21
    $region20: #{tpu_custom_call.1} parent=1 // pred_region
      %46 = dma.done [#allocation6], 128
    $region21: #{tpu_custom_call.1} parent=1 // pred_fallthru
      _
    // Predicated region
    $region22: #{tpu_custom_call.1} parent=1 // pred_check
      _
    $region23: #{tpu_custom_call.1} parent=1 // pred_check_branch
      %48 = sbr.rel (0) target = $region25
    $region24: #{tpu_custom_call.1} parent=1 // pred_region
      %49 = dma.done [#allocation6], 128
    $region25: #{tpu_custom_call.1} parent=1 // pred_fallthru
      _
    %v50 = vld [vmem:[#allocation2] sm:$0xff]
    %v51 = vld [vmem:[#allocation5] sm:$0xff]
    %v52 = vld [vmem:[#allocation7] sm:$0xff]
    %v53 = vsub.f32 1.0, %v51
    %v54 = vmul.f32 %v53, %v52
    %v55 = vmax.f32 %v50, 0.0
    %v56 = vmul.f32 %v50, %v52
    %v57 = vsub.f32 %v55, %v56
    %v58 = vand.u32 2147483647, %v50
    %v59 = vsub.f32 0.0, %v58
    %v60 = vmul.f32 %v59, 1.442695
    %v61 = vpow.pop %v60
    %v62 = vadd.f32 %v61, 1.0
    %v63 = vlog2.pop %v62
    %v64 = vmul.f32 %v63, 0.6931472
    %v65 = vmul.f32 -0.5, %v61
    %v66 = vadd.f32 %v65, 1.0
    %v67 = vmul.f32 %v66, %v61
    %v68 = vand.u32 2147483647, %v61
    %vm69 = vcmp.lt.f32.partialorder %v68, 0.0004427343
    %v70 = vsel %vm69, %v67, %v64
    %v71 = vadd.f32 %v57, %v70
    %v72 = vmul.f32 %v54, %v71
    %v73 = vadd.f32 %v72, 0.0
    %74 = vst [vmem:[#allocation8] sm:$0xff] %v73
    // Predicated region
    $region26: #{tpu_custom_call.1} parent=1 // pred_check
      _
    $region27: #{tpu_custom_call.1} parent=1 // pred_check_branch
      %76 = sbr.rel (0) target = $region29
    $region28: #{tpu_custom_call.1} parent=1 // pred_region
      %s78 = ssub.s32 128, 128
      %79 = vsyncadd [#allocation4], %s78
      %s81 = sshll.u32 [#allocation8], 4
      %s82 = int_to_ptr.vmem [resolvable:$true] %s81
      %84 = dma.vmem_to_hbm [thread:$0]  %s82, 128, %s3, [#allocation4]
    $region29: #{tpu_custom_call.1} parent=1 // pred_fallthru
      _
    // Predicated region
    $region30: #{tpu_custom_call.1} parent=1 // pred_check
      _
    $region31: #{tpu_custom_call.1} parent=1 // pred_check_branch
      %86 = sbr.rel (0) target = $region33
    $region32: #{tpu_custom_call.1} parent=1 // pred_region
      %87 = dma.done [#allocation4], 128
    $region33: #{tpu_custom_call.1} parent=1 // pred_fallthru
      _
    %88 = vsyncpa [#allocation3], 1
    %89 = vsyncpa [#allocation6], 1
    %90 = vsyncpa [#allocation4], 1

</llo_original>
